<compile_context>
chip_gen: v7x
topology: tpu7x:2x2x1
jax: 0.10.0
libtpu: 0.0.40
codegen_flags: <defaults>
</compile_context>

<pallas_src>
import functools

import jax
import jax.numpy as jnp
import numpy as np
from jax import lax
from jax.experimental import pallas as pl
from jax.experimental.pallas import tpu as pltpu

NEG_SLOPE = 0.1      # LeakyReLU(0.1) everywhere in the reference module
HALO_BLK = 128       # width of the extra halo block (first 128 cols of next tile)
MAX_TILE_T = 512     # default lane-dense tile cap (VMEM budget may shrink it)


def _round_up(v, m):
    return ((v + m - 1) // m) * m


try:
    _VMEM_CAP = int(pltpu.get_tpu_info().vmem_capacity_bytes)
except Exception:                                  # pragma: no cover
    _VMEM_CAP = 64 * 1024 * 1024                   # conservative (v7x per-TC)
_VMEM_BUDGET = min(_VMEM_CAP // 3, 24 * 1024 * 1024)
_VMEM_LIMIT = int(min(_VMEM_CAP * 3 // 4, 96 * 1024 * 1024))


def get_padding(k, d):
    # standard HiFi-GAN "same" padding for dilated convs
    return (k * d - d) // 2


# --------------------------------------------------------------------------
# Pallas kernel: fused [LeakyReLU] -> dilated Conv1d (+bias) -> [tanh]
# One output tile (Cout_p, tile_t) per grid step, computed as a single
# (Cout_p, K*Cin) x (K*Cin, tile_t) bf16 MXU matmul with f32 accumulation.
# --------------------------------------------------------------------------
def _conv1d_kernel(x_ref, xh_ref, w_ref, b_ref, o_ref, xcol_ref, *,
                   K, dilation, leaky_pre, tanh_post):
    # x_ref : (1, Cin, tile_t)    current input tile (already left/right padded)
    # xh_ref: (1, Cin, 128)       first 128 cols of the NEXT tile (halo only)
    # w_ref : (Cout_p, K*Cin)     lane-dense weight, bf16
    # b_ref : (Cout_p, 1)         bias, f32
    # o_ref : (1, Cout_p, tile_t) output tile (bf16 for hidden layers)
    # xcol  : (K*Cin, tile_t)     im2col scratch (bf16 if Cin%16==0 else f32)
    cin = x_ref.shape[1]
    tile_t = x_ref.shape[2]
    halo = dilation * (K - 1)
    sdt = xcol_ref.dtype

    x = x_ref[0]                                            # (Cin, tile_t)
    if leaky_pre:
        # padding zeros are fixed points of LeakyReLU, so fusing it after the
        # wrapper-side zero pad is exactly equivalent to applying it before.
        x = jnp.where(x > 0, x, NEG_SLOPE * x)
    x = x.astype(sdt)
    if halo > 0:
        xh = xh_ref[0, :, :halo]                            # (Cin, halo)
        if leaky_pre:
            xh = jnp.where(xh > 0, xh, NEG_SLOPE * xh)
        xh = xh.astype(sdt)

    # im2col: stack the K dilation-shifted views -> one big contraction dim,
    # so the whole tile is a single MXU matmul (no K micro-matmuls).
    for j in range(K):                                      # K small & static
        off = j * dilation
        rows = slice(j * cin, (j + 1) * cin)
        if off == 0:
            xcol_ref[rows, :] = x
        else:
            xcol_ref[rows, :tile_t - off] = x[:, off:]
            xcol_ref[rows, tile_t - off:] = xh[:, :off]

    xcol = xcol_ref[...]
    if xcol.dtype != jnp.bfloat16:
        xcol = xcol.astype(jnp.bfloat16)
    acc = jnp.dot(w_ref[...], xcol,
                  preferred_element_type=jnp.float32)       # (Cout_p, tile_t)
    acc = acc + b_ref[...]
    if tanh_post:
        acc = jnp.tanh(acc)
    o_ref[0] = acc.astype(o_ref.dtype)


def _pick_tile_t(cin, cout_p, k, in_bytes, out_bytes, t_out, tile_t=None):
    """Largest 128-multiple tile (<= MAX_TILE_T) fitting the VMEM budget."""
    if tile_t is not None:
        assert tile_t % 128 == 0 and tile_t >= 128
        return tile_t
    tile = min(MAX_TILE_T, max(128, _round_up(t_out, 128)))
    xcol_bytes = 2 if cin % 16 == 0 else 4

    def est(tt):
        return (2 * cin * tt * in_bytes            # double-buffered input tile
                + 2 * cin * HALO_BLK * in_bytes    # double-buffered halo block
                + 2 * cout_p * tt * out_bytes      # double-buffered output tile
                + k * cin * tt * xcol_bytes        # im2col scratch
                + 2 * cout_p * k * cin * 2         # bf16 weight (conservative)
                + cout_p * 8)                      # bias

    while tile > 128 and est(tile) > _VMEM_BUDGET:
        tile -= 128
    return tile


def _conv1d_raw(x, w, b, *, dilation, pad_left, t_out,
                leaky_pre=False, tanh_post=False,
                out_dtype=jnp.bfloat16, tile_t=None):
    """Generic dilated conv: output[t] uses x[t - pad_left + j*dilation].

    x: (B, Cin, T), w: (Cout, Cin, K) [PyTorch layout], b: (Cout,).
    Returns (B, Cout, t_out) in out_dtype (f32 accumulation inside).
    """
    B, Cin, T = x.shape
    Cout, _, K = w.shape
    halo = dilation * (K - 1)
    assert halo < HALO_BLK, "conv halo must fit inside the 128-wide halo block"

    if pad_left < 0:                      # negative left pad == crop the front
        x = x[:, :, -pad_left:]
        T = x.shape[2]
        pad_left = 0

    Cout_p = _round_up(Cout, 8)
    in_bytes = jnp.dtype(x.dtype).itemsize
    out_bytes = jnp.dtype(out_dtype).itemsize
    tile_t = _pick_tile_t(Cin, Cout_p, K, in_bytes, out_bytes, t_out, tile_t)

    nT = int(pl.cdiv(t_out, tile_t))
    # one extra 128-wide block of zeros so the halo spec is always in range
    T_padded = nT * tile_t + HALO_BLK
    pad_right = T_padded - pad_left - T
    assert pad_right >= 0
    x_p = jnp.pad(x, ((0, 0), (0, 0), (pad_left, pad_right)))

    # lane-dense 2D weight; pad Cout up to a full sublane (conv_post: 1 -> 8)
    w2 = jnp.transpose(w, (0, 2, 1)).reshape(Cout, K * Cin)
    if Cout_p != Cout:
        w2 = jnp.pad(w2, ((0, Cout_p - Cout), (0, 0)))
        b = jnp.pad(b, ((0, Cout_p - Cout),))
    w2 = w2.astype(jnp.bfloat16)
    b2 = b.reshape(Cout_p, 1).astype(jnp.float32)

    xcol_dtype = jnp.bfloat16 if Cin % 16 == 0 else jnp.float32
    tm = tile_t // HALO_BLK

    kernel = functools.partial(_conv1d_kernel, K=K, dilation=dilation,
                               leaky_pre=leaky_pre, tanh_post=tanh_post)
    out = pl.pallas_call(
        kernel,
        out_shape=jax.ShapeDtypeStruct((B, Cout_p, nT * tile_t), out_dtype),
        grid=(B, nT),
        in_specs=[
            pl.BlockSpec((1, Cin, tile_t), lambda bi, ti: (bi, 0, ti)),
            # 128-wide halo from the next tile (same array, narrower block)
            pl.BlockSpec((1, Cin, HALO_BLK),
                         lambda bi, ti: (bi, 0, (ti + 1) * tm)),
            pl.BlockSpec((Cout_p, K * Cin), lambda bi, ti: (0, 0)),   # weight
            pl.BlockSpec((Cout_p, 1), lambda bi, ti: (0, 0)),         # bias
        ],
        out_specs=pl.BlockSpec((1, Cout_p, tile_t), lambda bi, ti: (bi, 0, ti)),
        scratch_shapes=[pltpu.VMEM((K * Cin, tile_t), xcol_dtype)],
        compiler_params=pltpu.CompilerParams(
            dimension_semantics=("parallel", "parallel"),
            vmem_limit_bytes=_VMEM_LIMIT),
    )(x_p, x_p, w2, b2)
    return out[:, :Cout, :t_out]


def conv1d_pallas(x, w, b, *, dilation=1, padding=0,
                  leaky_pre=False, tanh_post=False, out_dtype=jnp.bfloat16):
    """PyTorch-style Conv1d (stride 1)."""
    K = w.shape[2]
    T = x.shape[2]
    t_out = T + 2 * padding - dilation * (K - 1)
    return _conv1d_raw(x, w, b, dilation=dilation, pad_left=padding,
                       t_out=t_out, leaky_pre=leaky_pre, tanh_post=tanh_post,
                       out_dtype=out_dtype)


def conv_transpose1d_pallas(x, w_t, b, *, stride, padding, leaky_pre=False,
                            out_dtype=jnp.bfloat16):
    """PyTorch-style ConvTranspose1d via a FUSED polyphase decomposition.

    x: (B, Cin, T), w_t: (Cin, Cout, K) [PyTorch ConvTranspose1d layout].
    All s phases are packed into one stride-1 conv with weight
    (s*Cout, Cin, NB): phase r's taps sit at band offsets off0[r]..; a single
    pallas_call produces all phases (x read once, LeakyReLU once), and the
    wrapper interleaves them with one transpose + free reshape.
    """
    B, Cin, T = x.shape
    _, Cout, K = w_t.shape
    s = stride
    P = K - 1 - padding
    w_conv = jnp.transpose(w_t, (1, 0, 2))[:, :, ::-1]      # (Cout, Cin, K)
    T_out = (T - 1) * s + K - 2 * padding                   # PyTorch length
    T_q = int(pl.cdiv(T_out, s))                            # per-phase length

    # per-phase tap subsets and left-pads (same math as the verified per-phase
    # polyphase decomposition; no zero-stuffing, no MXU work on structural 0s)
    phase_taps, phase_pad = [], []
    for r in range(s):
        k_r = (P - r) % s
        taps = w_conv[:, :, k_r::s]                         # (Cout, Cin, K_r)
        assert taps.shape[2] >= 1
        delta = (r + k_r - P) // s                          # exact by constr.
        phase_taps.append(taps)
        phase_pad.append(-delta)                            # left pad, phase r
    PL = max(0, max(phase_pad))
    off0 = [PL - p for p in phase_pad]                      # all >= 0
    NB = max(o + t.shape[2] for o, t in zip(off0, phase_taps))

    # pack all phases into ONE stride-1 conv weight of shape (s*Cout, Cin, NB)
    w_all = jnp.zeros((s, Cout, Cin, NB), w_conv.dtype)
    for r in range(s):
        kr = phase_taps[r].shape[2]
        w_all = w_all.at[r, :, :, off0[r]:off0[r] + kr].set(phase_taps[r])
    w_all = w_all.reshape(s * Cout, Cin, NB)
    b_all = jnp.tile(b, (s,))

    y = _conv1d_raw(x, w_all, b_all, dilation=1, pad_left=PL, t_out=T_q,
                    leaky_pre=leaky_pre, out_dtype=out_dtype)  # (B, s*Cout, T_q)

    # interleave phases: out[:, :, q*s + r] = y[:, r*Cout + c, q]
    y = y.reshape(B, s, Cout, T_q)
    y = jnp.transpose(y, (0, 2, 3, 1)).reshape(B, Cout, T_q * s)
    return y[:, :, :T_out]


# --------------------------------------------------------------------------
# Pure-JAX reference (lax convs) used only for a numerical sanity check.
# Same numerics as the kernels: bf16 inputs/weights, f32 accumulation, and
# the same (bf16) inter-layer activation dtype.
# --------------------------------------------------------------------------
def conv1d_ref(x, w, b, *, dilation=1, padding=0,
               leaky_pre=False, tanh_post=False, out_dtype=jnp.float32):
    if leaky_pre:
        x = jnp.where(x > 0, x, NEG_SLOPE * x)
    y = lax.conv_general_dilated(
        x.astype(jnp.bfloat16), w.astype(jnp.bfloat16),
        window_strides=(1,), padding=[(padding, padding)],
        rhs_dilation=(dilation,), dimension_numbers=('NCH', 'OIH', 'NCH'),
        preferred_element_type=jnp.float32)
    y = y + b[None, :, None].astype(jnp.float32)
    if tanh_post:
        y = jnp.tanh(y)
    return y.astype(out_dtype)


def conv_transpose1d_ref(x, w_t, b, *, stride, padding, leaky_pre=False,
                         out_dtype=jnp.float32):
    if leaky_pre:
        x = jnp.where(x > 0, x, NEG_SLOPE * x)
    K = w_t.shape[2]
    w_conv = jnp.transpose(w_t, (1, 0, 2))[:, :, ::-1]
    y = lax.conv_general_dilated(
        x.astype(jnp.bfloat16), w_conv.astype(jnp.bfloat16),
        window_strides=(1,),
        padding=[(K - 1 - padding, K - 1 - padding)],
        lhs_dilation=(stride,), dimension_numbers=('NCH', 'OIH', 'NCH'),
        preferred_element_type=jnp.float32)
    y = y + b[None, :, None].astype(jnp.float32)
    return y.astype(out_dtype)


# --------------------------------------------------------------------------
# Generator (ResBlock / MRF / GeneratorBlock) forward, parameterized by the
# conv implementations so the same code runs the Pallas path and the ref path.
# --------------------------------------------------------------------------
def resblock_fwd(x, kr, D, rb_params, conv_fn, act_dtype):
    # TODO(synk): fuse the residual add (and the whole inner chain) into the
    #             last conv's pallas_call to remove the extra HBM passes.
    for i, Di in enumerate(D):                       # outer cycle: residual add
        h = x
        for j, d in enumerate(Di):                   # inner cycle: LReLU+Conv1d
            w, b = rb_params[i][j]
            h = conv_fn(h, w, b, dilation=d, padding=get_padding(kr, d),
                        leaky_pre=True, out_dtype=act_dtype)
        x = x + h
    return x


def mrf_fwd(x, mrf_params, conv_fn, act_dtype):
    out = jnp.zeros_like(x)
    for (kr, D, rb) in mrf_params:
        out = out + resblock_fwd(x, kr, D, rb, conv_fn, act_dtype)
    return out / len(mrf_params)


def generator_fwd(params, x, conv_fn, convT_fn, act_dtype=jnp.bfloat16):
    w, b = params['conv_pre']
    x = conv_fn(x, w, b, dilation=1, padding=3, out_dtype=act_dtype)
    for ku, blk in params['blocks']:
        wt, bt = blk['up']
        x = convT_fn(x, wt, bt, stride=ku // 2, padding=ku // 4,
                     leaky_pre=True, out_dtype=act_dtype)
        x = mrf_fwd(x, blk['mrf'], conv_fn, act_dtype)
    w, b = params['conv_post']
    return conv_fn(x, w, b, dilation=1, padding=3, leaky_pre=True,
                   tanh_post=True, out_dtype=jnp.float32)


# --------------------------------------------------------------------------
# Deterministic parameter construction (synthetic weights, not a checkpoint)
# --------------------------------------------------------------------------
def _init_conv(key, cout, cin, k, scale=0.1):
    kw, kb = jax.random.split(key)
    w = scale * jax.random.normal(kw, (cout, cin, k), jnp.float32)
    b = scale * jax.random.normal(kb, (cout,), jnp.float32)
    return w, b


def _init_convT(key, cin, cout, k, scale=0.1):
    kw, kb = jax.random.split(key)
    w = scale * jax.random.normal(kw, (cin, cout, k), jnp.float32)
    b = scale * jax.random.normal(kb, (cout,), jnp.float32)
    return w, b


def build_generator_params(key, config, mel_config):
    params = {}
    channels = config.h_u
    key, k0 = jax.random.split(key)
    params['conv_pre'] = _init_conv(k0, channels, mel_config.n_mels, 7)
    params['blocks'] = []
    for ku in config.k_u:
        out_ch = channels // 2
        key, kt = jax.random.split(key)
        blk = {'up': _init_convT(kt, channels, out_ch, ku), 'mrf': []}
        for kr, D in zip(config.k_r, config.D_r):
            rb = []
            for Di in D:
                inner = []
                for _ in Di:
                    key, kc = jax.random.split(key)
                    inner.append(_init_conv(kc, out_ch, out_ch, kr))
                rb.append(inner)
            blk['mrf'].append((kr, D, rb))
        params['blocks'].append((ku, blk))
        channels = out_ch
    key, kf = jax.random.split(key)
    params['conv_post'] = _init_conv(kf, 1, channels, 7)
    return params


class Config:
    h_u = 32
    k_u = [4, 4]                      # two x2 upsampling blocks
    k_r = [3, 5]
    D_r = [[[1], [2]], [[1], [2]]]    # per-k: outer_cycle=2, inner_cycle=1


class MelConfig:
    n_mels = 8


if __name__ == "__main__":
    config = Config()
    mel_config = MelConfig()

    key = jax.random.PRNGKey(0)
    pkey, xkey = jax.random.split(key)
    params = build_generator_params(pkey, config, mel_config)

    B, T = 2, 16
    x = jax.random.normal(xkey, (B, mel_config.n_mels, T), jnp.float32)

    out = generator_fwd(params, x, conv1d_pallas, conv_transpose1d_pallas)
    out = jax.block_until_ready(out)

    # expected output: (B, 1, T * prod(k_u // 2)) = (2, 1, 64), f32
    assert out.shape == (B, 1, T * 4), out.shape
    assert out.dtype == jnp.float32, out.dtype

    ref = generator_fwd(params, x, conv1d_ref, conv_transpose1d_ref)
    ref = jax.block_until_ready(ref)
    # both paths now use bf16 inter-layer activations; tolerance sized for bf16
    np.testing.assert_allclose(np.asarray(out), np.asarray(ref),
                               rtol=1e-2, atol=1e-2)

    print("KERNEL_OK")
</pallas_src>

<mosaic_0001>
module attributes {stable_mosaic.version = 11 : i64} {
  func.func @_conv1d_kernel(%arg0: i32, %arg1: i32, %arg2: memref<1x8x128xf32, #tpu.memory_space<vmem>>, %arg3: memref<1x8x128xf32, #tpu.memory_space<vmem>>, %arg4: memref<32x56xbf16, #tpu.memory_space<vmem>>, %arg5: memref<32x1xf32, #tpu.memory_space<vmem>>, %arg6: memref<1x32x128xbf16, #tpu.memory_space<vmem>>, %arg7: memref<56x128xf32, #tpu.memory_space<vmem>>) attributes {dimension_semantics = [#tpu.dimension_semantics<parallel>, #tpu.dimension_semantics<parallel>], iteration_bounds = array<i64: 2, 1>, scalar_prefetch = 0 : i64, scratch_operands = 1 : i64, tpu.core_type = #tpu.core_type<tc>, window_params = [{transform_indices = @transform_0, window_bounds = array<i64: 1, 8, 128>}, {transform_indices = @transform_1, window_bounds = array<i64: 1, 8, 128>}, {pipeline_mode = #tpu.pipeline_mode<synchronous>, transform_indices = @transform_2, window_bounds = array<i64: 32, 56>}, {pipeline_mode = #tpu.pipeline_mode<synchronous>, transform_indices = @transform_3, window_bounds = array<i64: 32, 1>}, {transform_indices = @transform_4, window_bounds = array<i64: 1, 32, 128>}]} {
    %c0 = arith.constant 0 : index
    %c0_0 = arith.constant 0 : index
    %c0_1 = arith.constant 0 : index
    %0 = vector.load %arg2[%c0, %c0_0, %c0_1] : memref<1x8x128xf32, #tpu.memory_space<vmem>>, vector<1x8x128xf32>
    %1 = vector.shape_cast %0 : vector<1x8x128xf32> to vector<8x128xf32>
    %c0_2 = arith.constant 0 : index
    %c0_3 = arith.constant 0 : index
    %c0_4 = arith.constant 0 : index
    %2 = vector.load %arg3[%c0_2, %c0_3, %c0_4] : memref<1x8x128xf32, #tpu.memory_space<vmem>>, vector<1x8x6xf32>
    %3 = vector.shape_cast %2 : vector<1x8x6xf32> to vector<8x6xf32>
    %c0_5 = arith.constant 0 : index
    %c0_6 = arith.constant 0 : index
    %4 = vector.load %arg7[%c0_5, %c0_6] : memref<56x128xf32, #tpu.memory_space<vmem>>, vector<8x128xf32>
    tpu.vector_store %arg7[%c0_5, %c0_6], %1 {strides = array<i32>} : memref<56x128xf32, #tpu.memory_space<vmem>>, vector<8x128xf32>,
    %5 = vector.extract_strided_slice %1 {offsets = [0, 1], sizes = [8, 127], strides = [1, 1]} : vector<8x128xf32> to vector<8x127xf32>
    %c8 = arith.constant 8 : index
    %c0_7 = arith.constant 0 : index
    %6 = vector.load %arg7[%c8, %c0_7] : memref<56x128xf32, #tpu.memory_space<vmem>>, vector<8x127xf32>
    tpu.vector_store %arg7[%c8, %c0_7], %5 {strides = array<i32>} : memref<56x128xf32, #tpu.memory_space<vmem>>, vector<8x127xf32>,
    %7 = vector.extract_strided_slice %3 {offsets = [0, 0], sizes = [8, 1], strides = [1, 1]} : vector<8x6xf32> to vector<8x1xf32>
    %c8_8 = arith.constant 8 : index
    %c127 = arith.constant 127 : index
    %8 = vector.load %arg7[%c8_8, %c127] : memref<56x128xf32, #tpu.memory_space<vmem>>, vector<8x1xf32>
    tpu.vector_store %arg7[%c8_8, %c127], %7 {strides = array<i32>} : memref<56x128xf32, #tpu.memory_space<vmem>>, vector<8x1xf32>,
    %9 = vector.extract_strided_slice %1 {offsets = [0, 2], sizes = [8, 126], strides = [1, 1]} : vector<8x128xf32> to vector<8x126xf32>
    %c16 = arith.constant 16 : index
    %c0_9 = arith.constant 0 : index
    %10 = vector.load %arg7[%c16, %c0_9] : memref<56x128xf32, #tpu.memory_space<vmem>>, vector<8x126xf32>
    tpu.vector_store %arg7[%c16, %c0_9], %9 {strides = array<i32>} : memref<56x128xf32, #tpu.memory_space<vmem>>, vector<8x126xf32>,
    %11 = vector.extract_strided_slice %3 {offsets = [0, 0], sizes = [8, 2], strides = [1, 1]} : vector<8x6xf32> to vector<8x2xf32>
    %c16_10 = arith.constant 16 : index
    %c126 = arith.constant 126 : index
    %12 = vector.load %arg7[%c16_10, %c126] : memref<56x128xf32, #tpu.memory_space<vmem>>, vector<8x2xf32>
    tpu.vector_store %arg7[%c16_10, %c126], %11 {strides = array<i32>} : memref<56x128xf32, #tpu.memory_space<vmem>>, vector<8x2xf32>,
    %13 = vector.extract_strided_slice %1 {offsets = [0, 3], sizes = [8, 125], strides = [1, 1]} : vector<8x128xf32> to vector<8x125xf32>
    %c24 = arith.constant 24 : index
    %c0_11 = arith.constant 0 : index
    %14 = vector.load %arg7[%c24, %c0_11] : memref<56x128xf32, #tpu.memory_space<vmem>>, vector<8x125xf32>
    tpu.vector_store %arg7[%c24, %c0_11], %13 {strides = array<i32>} : memref<56x128xf32, #tpu.memory_space<vmem>>, vector<8x125xf32>,
    %15 = vector.extract_strided_slice %3 {offsets = [0, 0], sizes = [8, 3], strides = [1, 1]} : vector<8x6xf32> to vector<8x3xf32>
    %c24_12 = arith.constant 24 : index
    %c125 = arith.constant 125 : index
    %16 = vector.load %arg7[%c24_12, %c125] : memref<56x128xf32, #tpu.memory_space<vmem>>, vector<8x3xf32>
    tpu.vector_store %arg7[%c24_12, %c125], %15 {strides = array<i32>} : memref<56x128xf32, #tpu.memory_space<vmem>>, vector<8x3xf32>,
    %17 = vector.extract_strided_slice %1 {offsets = [0, 4], sizes = [8, 124], strides = [1, 1]} : vector<8x128xf32> to vector<8x124xf32>
    %c32 = arith.constant 32 : index
    %c0_13 = arith.constant 0 : index
    %18 = vector.load %arg7[%c32, %c0_13] : memref<56x128xf32, #tpu.memory_space<vmem>>, vector<8x124xf32>
    tpu.vector_store %arg7[%c32, %c0_13], %17 {strides = array<i32>} : memref<56x128xf32, #tpu.memory_space<vmem>>, vector<8x124xf32>,
    %19 = vector.extract_strided_slice %3 {offsets = [0, 0], sizes = [8, 4], strides = [1, 1]} : vector<8x6xf32> to vector<8x4xf32>
    %c32_14 = arith.constant 32 : index
    %c124 = arith.constant 124 : index
    %20 = vector.load %arg7[%c32_14, %c124] : memref<56x128xf32, #tpu.memory_space<vmem>>, vector<8x4xf32>
    tpu.vector_store %arg7[%c32_14, %c124], %19 {strides = array<i32>} : memref<56x128xf32, #tpu.memory_space<vmem>>, vector<8x4xf32>,
    %21 = vector.extract_strided_slice %1 {offsets = [0, 5], sizes = [8, 123], strides = [1, 1]} : vector<8x128xf32> to vector<8x123xf32>
    %c40 = arith.constant 40 : index
    %c0_15 = arith.constant 0 : index
    %22 = vector.load %arg7[%c40, %c0_15] : memref<56x128xf32, #tpu.memory_space<vmem>>, vector<8x123xf32>
    tpu.vector_store %arg7[%c40, %c0_15], %21 {strides = array<i32>} : memref<56x128xf32, #tpu.memory_space<vmem>>, vector<8x123xf32>,
    %23 = vector.extract_strided_slice %3 {offsets = [0, 0], sizes = [8, 5], strides = [1, 1]} : vector<8x6xf32> to vector<8x5xf32>
    %c40_16 = arith.constant 40 : index
    %c123 = arith.constant 123 : index
    %24 = vector.load %arg7[%c40_16, %c123] : memref<56x128xf32, #tpu.memory_space<vmem>>, vector<8x5xf32>
    tpu.vector_store %arg7[%c40_16, %c123], %23 {strides = array<i32>} : memref<56x128xf32, #tpu.memory_space<vmem>>, vector<8x5xf32>,
    %25 = vector.extract_strided_slice %1 {offsets = [0, 6], sizes = [8, 122], strides = [1, 1]} : vector<8x128xf32> to vector<8x122xf32>
    %c48 = arith.constant 48 : index
    %c0_17 = arith.constant 0 : index
    %26 = vector.load %arg7[%c48, %c0_17] : memref<56x128xf32, #tpu.memory_space<vmem>>, vector<8x122xf32>
    tpu.vector_store %arg7[%c48, %c0_17], %25 {strides = array<i32>} : memref<56x128xf32, #tpu.memory_space<vmem>>, vector<8x122xf32>,
    %c48_18 = arith.constant 48 : index
    %c122 = arith.constant 122 : index
    %27 = vector.load %arg7[%c48_18, %c122] : memref<56x128xf32, #tpu.memory_space<vmem>>, vector<8x6xf32>
    tpu.vector_store %arg7[%c48_18, %c122], %3 {strides = array<i32>} : memref<56x128xf32, #tpu.memory_space<vmem>>, vector<8x6xf32>,
    %c0_19 = arith.constant 0 : index
    %c0_20 = arith.constant 0 : index
    %28 = vector.load %arg7[%c0_19, %c0_20] : memref<56x128xf32, #tpu.memory_space<vmem>>, vector<56x128xf32>
    %29 = arith.truncf %28 : vector<56x128xf32> to vector<56x128xbf16>
    %c0_21 = arith.constant 0 : index
    %c0_22 = arith.constant 0 : index
    %30 = vector.load %arg4[%c0_21, %c0_22] : memref<32x56xbf16, #tpu.memory_space<vmem>>, vector<32x56xbf16>
    %cst = arith.constant dense<0.000000e+00> : vector<32x128xf32>
    %31 = tpu.matmul %30, %29, %cst {dimension_numbers = #tpu.dot_dimension_numbers<[1], [0], [0], [1], [0, 0, 1, 1], [], []>} : vector<32x56xbf16>, vector<56x128xbf16>, vector<32x128xf32> -> vector<32x128xf32>
    %c0_23 = arith.constant 0 : index
    %c0_24 = arith.constant 0 : index
    %32 = vector.load %arg5[%c0_23, %c0_24] : memref<32x1xf32, #tpu.memory_space<vmem>>, vector<32x1xf32>
    %33 = vector.broadcast %32 : vector<32x1xf32> to vector<32x128xf32>
    %34 = arith.addf %31, %33 : vector<32x128xf32>
    %35 = arith.truncf %34 : vector<32x128xf32> to vector<32x128xbf16>
    %c0_25 = arith.constant 0 : index
    %c0_26 = arith.constant 0 : index
    %c0_27 = arith.constant 0 : index
    %36 = vector.load %arg6[%c0_25, %c0_26, %c0_27] : memref<1x32x128xbf16, #tpu.memory_space<vmem>>, vector<1x32x128xbf16>
    %37 = vector.shape_cast %36 : vector<1x32x128xbf16> to vector<32x128xbf16>
    %38 = vector.shape_cast %35 : vector<32x128xbf16> to vector<1x32x128xbf16>
    tpu.vector_store %arg6[%c0_25, %c0_26, %c0_27], %38 {strides = array<i32>} : memref<1x32x128xbf16, #tpu.memory_space<vmem>>, vector<1x32x128xbf16>,
    return
  }
  func.func @transform_0(%arg0: i32, %arg1: i32) -> (i32, i32, i32) {
    %c0_i32 = arith.constant 0 : i32
    %c0_i32_0 = arith.constant 0 : i32
    return %arg0, %c0_i32, %arg1 : i32, i32, i32
  }
  func.func @transform_1(%arg0: i32, %arg1: i32) -> (i32, i32, i32) {
    %c1_i32 = arith.constant 1 : i32
    %0 = arith.addi %arg1, %c1_i32 : i32
    %c1_i32_0 = arith.constant 1 : i32
    %1 = arith.muli %0, %c1_i32_0 : i32
    %c0_i32 = arith.constant 0 : i32
    %c0_i32_1 = arith.constant 0 : i32
    return %arg0, %c0_i32, %1 : i32, i32, i32
  }
  func.func @transform_2(%arg0: i32, %arg1: i32) -> (i32, i32) {
    %c0_i32 = arith.constant 0 : i32
    %c0_i32_0 = arith.constant 0 : i32
    %c0_i32_1 = arith.constant 0 : i32
    return %c0_i32, %c0_i32_0 : i32, i32
  }
  func.func @transform_3(%arg0: i32, %arg1: i32) -> (i32, i32) {
    %c0_i32 = arith.constant 0 : i32
    %c0_i32_0 = arith.constant 0 : i32
    %c0_i32_1 = arith.constant 0 : i32
    return %c0_i32, %c0_i32_0 : i32, i32
  }
  func.func @transform_4(%arg0: i32, %arg1: i32) -> (i32, i32, i32) {
    %c0_i32 = arith.constant 0 : i32
    %c0_i32_0 = arith.constant 0 : i32
    return %arg0, %c0_i32, %arg1 : i32, i32, i32
  }
}

</mosaic_0001>

<llo_original>
// kernel: tpu_custom_call.1
$region0: #{tpu_custom_call.1}
  #allocation0 [shape = 'u32[]', space=smem, size = 0x4, offset = 0x4, fixed_abs, tag = 'smem constant byte address 0x4 - core index']
  #allocation1 [shape = 'u32[144,128]{1,0:T(1,128)}', space=vmem, size = 0x12000, scoped, tag = 'internal scratch']
  #allocation2 [shape = 'f32[56,128]{1,0:T(8,128)}', space=vmem, size = 0x7000, scoped, tag = 'scratch operand']
  %s0 = inlined_call_operand.vmem [shape: f32[2,8,256], index: 0, kind: input, shape index: {}]
  %s1 = inlined_call_operand.hbm [shape: f32[2,8,256], index: 1, kind: input, shape index: {}]
  %s2 = inlined_call_operand.hbm [shape: bf16[32,56], index: 2, kind: input, shape index: {}]
  %s3 = inlined_call_operand.vmem [shape: f32[32,1], index: 3, kind: input, shape index: {}]
  %s4 = inlined_call_operand.hbm [shape: bf16[2,32,128], index: 4, kind: output, shape index: {}]
  %s5 = sld [smem:[#allocation0]]
  $region57: #{tpu_custom_call.1} parent=0
    _
  %s7 = ssub.s32 1, %s5
  %s8 = scalar_select 0, %s7, %s5
  $region1: #{tpu_custom_call.1} parent=0
    #allocation3 [shape = 'u8[8192]{0}', space=vmem, size = 0x2000, scoped, tag = 'input window, operand 1']
    #allocation4 [shape = 's32[2]{0}', space=sflag, size = 0x8, scoped, tag = 'scoped memory for tpu_custom_call.1']
    #allocation5 [shape = 's32[2]{0}', space=sflag, size = 0x8, scoped, tag = 'scoped memory for tpu_custom_call.1']
    #allocation6 [shape = 'u8[8192]{0}', space=vmem, size = 0x2000, scoped, tag = 'input window, operand 2, single buffered']
    #allocation7 [shape = 's32[1]{0}', space=sflag, size = 0x4, scoped, tag = 'scoped memory for tpu_custom_call.1']
    #allocation8 [shape = 'u8[16384]{0}', space=vmem, size = 0x4000, scoped, tag = 'output window, operand 0']
    %9 = vsyncpa [#allocation4], 0
    %s10 = scalar_lea.sflag [#allocation4], 1
    %11 = vsyncpa %s10, 0
    %12 = vsyncpa [#allocation7], 0
    %13 = vsyncpa [#allocation5], 0
    %s14 = scalar_lea.sflag [#allocation5], 1
    %15 = vsyncpa %s14, 0
    loop: start=0, step=1, limit=4
    $region2: #{tpu_custom_call.1} parent=1 // loop_pre_header
      _
    $region3: #{tpu_custom_call.1} parent=1 // loop_header
      %s17 = sphi 0, %s21
      %p18 = scmp.ge.s32.totalorder %s17, 4
      %s24 = sphi 0, %s36
      %s25 = sphi 0, %s32
      %s26 = sphi 0, %s24
      %s27 = sphi 0, %s25
      %s28 = sphi 0, %s26
      %s29 = sphi 0, %s27
      %s41 = sphi 0, %s43
      %s44 = sphi 0, %s41
      %s45 = sphi 0, %s44
      %s61 = sphi 0, %s45
      %s71 = sphi 0, %s73
      %s74 = sphi 0, %s71
      %s75 = sphi 0, %s74
      %s91 = sphi 0, %s75
      %s95 = sphi 0, %s95
      %s97 = sphi 0, %s95
      %s98 = sphi 0, %s97
      %s112 = sphi 0, %s98
      %s116 = sphi 0, %s116
      %s118 = sphi 0, %s116
      %s119 = sphi 0, %s118
      %s133 = sphi 0, %s119
      %s141 = sphi 0, %s143
      %s144 = sphi 0, %s141
      %s145 = sphi 0, %s144
      %s161 = sphi 0, %s145
    $region4: #{tpu_custom_call.1} parent=1 // loop_header_branch
      %20 = sbr.rel (%p18) target = $region8
    $region5: #{tpu_custom_call.1} parent=1 // loop_body
      %s22 = ssub.s32 %s17, 1
      %s23 = ssub.s32 %s17, 2
      %s30 = sadd.s32 1, %s25
      %p31 = scmp.ge.s32.totalorder %s30, 1
      %s32 = scalar_select %p31, 0, %s30
      %s33 = sadd.s32 1, %s24
      %s34 = scalar_select %p31, %s33, %s24
      %p35 = scmp.ge.s32.totalorder %s34, 2
      %s36 = scalar_select %p35, 0, %s34
      %s37 = ssub.s32 %s24, %s36
      %s38 = ssub.s32 %s25, %s32
      %s39 = sor.u32 %s37, %s38
      %p40 = scmp.eq.s32.totalorder %s39, 0
      %s42 = sadd.s32 %s41, 1
      %s43 = scalar_select %p40, %s41, %s42
      %p46 = pneg %p40
      %p47 = scmp.eq.s32.totalorder %s17, 1
      %p48 = por %p46, %p47
      %p49 = scmp.ne.s32.totalorder %s41, %s44
      %p50 = scmp.eq.s32.totalorder %s17, 0
      %p51 = por %p49, %p50
      %p52 = scmp.ne.s32.totalorder %s41, %s44
      %p53 = scmp.eq.s32.totalorder %s22, 1
      %p54 = por %p52, %p53
      %p55 = scmp.ne.s32.totalorder %s44, %s45
      %p56 = scmp.eq.s32.totalorder %s22, 0
      %p57 = por %p55, %p56
      %p58 = scmp.ne.s32.totalorder %s44, %s45
      %p59 = scmp.eq.s32.totalorder %s23, 1
      %p60 = por %p58, %p59
      %p62 = scmp.ne.s32.totalorder %s45, %s61
      %p63 = scmp.eq.s32.totalorder %s23, 0
      %p64 = por %p62, %p63
      %s65 = sadd.s32 %s25, 1
      %s66 = sadd.s32 %s32, 1
      %s67 = ssub.s32 %s24, %s36
      %s68 = ssub.s32 %s65, %s66
      %s69 = sor.u32 %s67, %s68
      %p70 = scmp.eq.s32.totalorder %s69, 0
      %s72 = sadd.s32 %s71, 1
      %s73 = scalar_select %p70, %s71, %s72
      %p76 = pneg %p70
      %p77 = scmp.eq.s32.totalorder %s17, 1
      %p78 = por %p76, %p77
      %p79 = scmp.ne.s32.totalorder %s71, %s74
      %p80 = scmp.eq.s32.totalorder %s17, 0
      %p81 = por %p79, %p80
      %p82 = scmp.ne.s32.totalorder %s71, %s74
      %p83 = scmp.eq.s32.totalorder %s22, 1
      %p84 = por %p82, %p83
      %p85 = scmp.ne.s32.totalorder %s74, %s75
      %p86 = scmp.eq.s32.totalorder %s22, 0
      %p87 = por %p85, %p86
      %p88 = scmp.ne.s32.totalorder %s74, %s75
      %p89 = scmp.eq.s32.totalorder %s23, 1
      %p90 = por %p88, %p89
      %p92 = scmp.ne.s32.totalorder %s75, %s91
      %p93 = scmp.eq.s32.totalorder %s23, 0
      %p94 = por %p92, %p93
      %s96 = sadd.s32 %s95, 1
      %p99 = scmp.eq.s32.totalorder %s17, 1
      %p100 = scmp.ne.s32.totalorder %s95, %s97
      %p101 = scmp.eq.s32.totalorder %s17, 0
      %p102 = por %p100, %p101
      %p103 = scmp.ne.s32.totalorder %s95, %s97
      %p104 = scmp.eq.s32.totalorder %s22, 1
      %p105 = por %p103, %p104
      %p106 = scmp.ne.s32.totalorder %s97, %s98
      %p107 = scmp.eq.s32.totalorder %s22, 0
      %p108 = por %p106, %p107
      %p109 = scmp.ne.s32.totalorder %s97, %s98
      %p110 = scmp.eq.s32.totalorder %s23, 1
      %p111 = por %p109, %p110
      %p113 = scmp.ne.s32.totalorder %s98, %s112
      %p114 = scmp.eq.s32.totalorder %s23, 0
      %p115 = por %p113, %p114
      %s117 = sadd.s32 %s116, 1
      %p120 = scmp.eq.s32.totalorder %s17, 1
      %p121 = scmp.ne.s32.totalorder %s116, %s118
      %p122 = scmp.eq.s32.totalorder %s17, 0
      %p123 = por %p121, %p122
      %p124 = scmp.ne.s32.totalorder %s116, %s118
      %p125 = scmp.eq.s32.totalorder %s22, 1
      %p126 = por %p124, %p125
      %p127 = scmp.ne.s32.totalorder %s118, %s119
      %p128 = scmp.eq.s32.totalorder %s22, 0
      %p129 = por %p127, %p128
      %p130 = scmp.ne.s32.totalorder %s118, %s119
      %p131 = scmp.eq.s32.totalorder %s23, 1
      %p132 = por %p130, %p131
      %p134 = scmp.ne.s32.totalorder %s119, %s133
      %p135 = scmp.eq.s32.totalorder %s23, 0
      %p136 = por %p134, %p135
      %s137 = ssub.s32 %s24, %s36
      %s138 = ssub.s32 %s25, %s32
      %s139 = sor.u32 %s137, %s138
      %p140 = scmp.eq.s32.totalorder %s139, 0
      %s142 = sadd.s32 %s141, 1
      %s143 = scalar_select %p140, %s141, %s142
      %p146 = pneg %p140
      %p147 = scmp.eq.s32.totalorder %s17, 1
      %p148 = por %p146, %p147
      %p149 = scmp.ne.s32.totalorder %s141, %s144
      %p150 = scmp.eq.s32.totalorder %s17, 0
      %p151 = por %p149, %p150
      %p152 = scmp.ne.s32.totalorder %s141, %s144
      %p153 = scmp.eq.s32.totalorder %s22, 1
      %p154 = por %p152, %p153
      %p155 = scmp.ne.s32.totalorder %s144, %s145
      %p156 = scmp.eq.s32.totalorder %s22, 0
      %p157 = por %p155, %p156
      %p158 = scmp.ne.s32.totalorder %s144, %s145
      %p159 = scmp.eq.s32.totalorder %s23, 1
      %p160 = por %p158, %p159
      %p162 = scmp.ne.s32.totalorder %s145, %s161
      %p163 = scmp.eq.s32.totalorder %s23, 0
      %p164 = por %p162, %p163
      %p165 = scmp.le.s32.totalorder 1, %s17
      %p166 = scmp.lt.s32.totalorder %s17, 3
      %p167 = pnand %p165, %p166
      %p168 = pneg %p167
      // Predicated region
      $region9: #{tpu_custom_call.1} parent=5 // pred_check
        _
      $region10: #{tpu_custom_call.1} parent=5 // pred_check_branch
        %170 = sbr.rel (%p167) target = $region12
      $region11: #{tpu_custom_call.1} parent=5 // pred_region
        %s171 = ssub.s32 %s17, 1
        // Predicated region
        $region13: #{tpu_custom_call.1} parent=11 // pred_check
          %p172 = pneg %p108
        $region14: #{tpu_custom_call.1} parent=11 // pred_check_branch
          %174 = sbr.rel (%p172) target = $region16
        $region15: #{tpu_custom_call.1} parent=11 // pred_region
          %s176 = ssub.s32 256, 256
          %177 = vsyncadd [#allocation7], %s176
          %s178 = sshll.u32 [#allocation6], 4
          %s179 = int_to_ptr.vmem [resolvable:$true] %s178
          %184 = dma.hbm_to_vmem [thread:$0]  %s2, 256, %s179, [#allocation7], 64, 64, 4
        $region16: #{tpu_custom_call.1} parent=11 // pred_fallthru
          _
        // Predicated region
        $region17: #{tpu_custom_call.1} parent=11 // pred_check
          %p185 = pneg %p129
        $region18: #{tpu_custom_call.1} parent=11 // pred_check_branch
          %187 = sbr.rel (%p185) target = $region20
        $region19: #{tpu_custom_call.1} parent=11 // pred_region
          _
        $region20: #{tpu_custom_call.1} parent=11 // pred_fallthru
          _
      $region12: #{tpu_custom_call.1} parent=5 // pred_fallthru
        _
      %p188 = scmp.lt.s32.totalorder %s17, 2
      // Predicated region
      $region21: #{tpu_custom_call.1} parent=5 // pred_check
        %p189 = pneg %p188
      $region22: #{tpu_custom_call.1} parent=5 // pred_check_branch
        %191 = sbr.rel (%p189) target = $region24
      $region23: #{tpu_custom_call.1} parent=5 // pred_region
        // Predicated region
        $region25: #{tpu_custom_call.1} parent=23 // pred_check
          %p192 = pneg %p51
        $region26: #{tpu_custom_call.1} parent=23 // pred_check_branch
          %194 = sbr.rel (%p192) target = $region28
        $region27: #{tpu_custom_call.1} parent=23 // pred_region
          %p195 = scmp.lt.s32.totalorder %s24, 1
          %s196 = scalar_select %p195, %s24, 1
          %p197 = scmp.lt.s32.totalorder %s25, 1
          %s198 = scalar_select %p197, %s25, 1
          %s199 = smul.addr %s196, 2
          %s200 = sadd.s32 %s198, %s199
          %s201 = smul.addr %s200, 8
          %s202 = scalar_lea.vmem %s0, %s201
        $region28: #{tpu_custom_call.1} parent=23 // pred_fallthru
          _
        // Predicated region
        $region29: #{tpu_custom_call.1} parent=23 // pred_check
          %p203 = pneg %p81
        $region30: #{tpu_custom_call.1} parent=23 // pred_check_branch
          %205 = sbr.rel (%p203) target = $region32
        $region31: #{tpu_custom_call.1} parent=23 // pred_region
          %s206 = sand.u32 %s71, 1
          %s207 = scalar_lea.sflag [#allocation4], %s206
          %s208 = sand.u32 %s71, 1
          %s209 = smul.addr %s208, 8
          %s210 = scalar_lea.vmem [#allocation3], %s209
          %s211 = sadd.s32 %s25, 1
          %s213 = ssub.s32 128, 128
          %214 = vsyncadd %s207, %s213
          %s215 = smul.addr %s24, 2
          %s216 = sadd.s32 %s211, %s215
          %s217 = smul.addr %s216, 128
          %s218 = scalar_lea.hbm %s1, %s217
          %s220 = sshll.u32 %s210, 4
          %s221 = int_to_ptr.vmem [resolvable:$true] %s220
          %223 = dma.hbm_to_vmem [thread:$0]  %s218, 128, %s221, %s207
        $region32: #{tpu_custom_call.1} parent=23 // pred_fallthru
          _
      $region24: #{tpu_custom_call.1} parent=5 // pred_fallthru
        _
      %p224 = scmp.le.s32.totalorder 1, %s17
      %p225 = scmp.lt.s32.totalorder %s17, 3
      %p226 = pnand %p224, %p225
      %p227 = pneg %p226
      // Predicated region
      $region33: #{tpu_custom_call.1} parent=5 // pred_check
        _
      $region34: #{tpu_custom_call.1} parent=5 // pred_check_branch
        %229 = sbr.rel (%p226) target = $region36
      $region35: #{tpu_custom_call.1} parent=5 // pred_region
        %s230 = ssub.s32 %s17, 1
        %s231 = sand.u32 %s74, 1
        %s232 = scalar_lea.sflag [#allocation4], %s231
        %s233 = sand.u32 %s74, 1
        %s234 = smul.addr %s233, 8
        %s235 = scalar_lea.vmem [#allocation3], %s234
        // Predicated region
        $region37: #{tpu_custom_call.1} parent=35 // pred_check
          %p236 = pneg %p87
        $region38: #{tpu_custom_call.1} parent=35 // pred_check_branch
          %238 = sbr.rel (%p236) target = $region40
        $region39: #{tpu_custom_call.1} parent=35 // pred_region
          %239 = dma.done %s232, 128
        $region40: #{tpu_custom_call.1} parent=35 // pred_fallthru
          _
        // Predicated region
        $region41: #{tpu_custom_call.1} parent=35 // pred_check
          %p240 = pneg %p108
        $region42: #{tpu_custom_call.1} parent=35 // pred_check_branch
          %242 = sbr.rel (%p240) target = $region44
        $region43: #{tpu_custom_call.1} parent=35 // pred_region
          %243 = dma.done [#allocation7], 256
        $region44: #{tpu_custom_call.1} parent=35 // pred_fallthru
          _
        %p244 = scmp.lt.s32.totalorder %s26, 1
        %s245 = scalar_select %p244, %s26, 1
        %p246 = scmp.lt.s32.totalorder %s27, 1
        %s247 = scalar_select %p246, %s27, 1
        %s248 = smul.addr %s245, 2
        %s249 = sadd.s32 %s247, %s248
        %s250 = smul.addr %s249, 8
        %s251 = scalar_lea.vmem %s0, %s250
        %p252 = pneg %p57
        %p253 = pneg %p54
        %s254 = sand.u32 %s74, 1
        %s255 = scalar_lea.sflag [#allocation4], %s254
        %s256 = sand.u32 %s74, 1
        %s257 = smul.addr %s256, 8
        %s258 = scalar_lea.vmem [#allocation3], %s257
        %p259 = pneg %p87
        %p260 = pneg %p84
        %p261 = pneg %p108
        %p262 = pneg %p105
        %p263 = pneg %p129
        %p264 = pneg %p126
        %p265 = pneg %p157
        %p266 = pneg %p154
        %s267 = sand.u32 %s144, 1
        %s268 = scalar_lea.sflag [#allocation5], %s267
        %s269 = sand.u32 %s144, 1
        %s270 = smul.addr %s269, 16
        %s271 = scalar_lea.vmem [#allocation8], %s270
        %p272 = scmp.lt.s32.totalorder %s26, 1
        %s273 = scalar_select %p272, %s26, 1
        %p274 = scmp.lt.s32.totalorder %s27, 1
        %s275 = scalar_select %p274, %s27, 1
        %s276 = smul.addr %s273, 2
        %s277 = sadd.s32 %s275, %s276
        %s278 = smul.addr %s277, 8
        %s279 = scalar_lea.vmem %s0, %s278
        %s280 = sadd.s32 %s27, 1
        %v282 = vld [vmem:[%s279] sm:$0xff]
        %v283 = vld [vmem:[%s235] sm:$0xff]
        %284 = vst [vmem:[#allocation2] sm:$0xff] %v282
        %286 = vrot.lane.b32.xlu0 %v282, 127
        %v287 = vpop.permute.xlu0 %286
        %vm289 = vcmask 1039360
        %290 = vst.msk [vmem:[#allocation2 + $0x8] sm:$0xff] %vm289, %v287
        %292 = vrot.lane.b32.xlu0 %v283, 127
        %v293 = vpop.permute.xlu0 %292
        %vm295 = vcmask 1048568
        %296 = vst.msk [vmem:[#allocation2 + $0x8] sm:$0xff] %vm295, %v293
        %297 = vrot.lane.b32.xlu0 %v282, 126
        %v298 = vpop.permute.xlu0 %297
        %vm300 = vcmask 1031168
        %301 = vst.msk [vmem:[#allocation2 + $0x10] sm:$0xff] %vm300, %v298
        %302 = vrot.lane.b32.xlu0 %v283, 126
        %v303 = vpop.permute.xlu0 %302
        %vm305 = vcmask 1048560
        %306 = vst.msk [vmem:[#allocation2 + $0x10] sm:$0xff] %vm305, %v303
        %307 = vrot.lane.b32.xlu0 %v282, 125
        %v308 = vpop.permute.xlu0 %307
        %vm310 = vcmask 1022976
        %311 = vst.msk [vmem:[#allocation2 + $0x18] sm:$0xff] %vm310, %v308
        %312 = vrot.lane.b32.xlu0 %v283, 125
        %v313 = vpop.permute.xlu0 %312
        %vm315 = vcmask 1048552
        %316 = vst.msk [vmem:[#allocation2 + $0x18] sm:$0xff] %vm315, %v313
        %317 = vrot.lane.b32.xlu0 %v282, 124
        %v318 = vpop.permute.xlu0 %317
        %vm320 = vcmask 1014784
        %321 = vst.msk [vmem:[#allocation2 + $0x20] sm:$0xff] %vm320, %v318
        %322 = vrot.lane.b32.xlu0 %v283, 124
        %v323 = vpop.permute.xlu0 %322
        %vm325 = vcmask 1048544
        %326 = vst.msk [vmem:[#allocation2 + $0x20] sm:$0xff] %vm325, %v323
        %327 = vrot.lane.b32.xlu0 %v282, 123
        %v328 = vpop.permute.xlu0 %327
        %vm330 = vcmask 1006592
        %331 = vst.msk [vmem:[#allocation2 + $0x28] sm:$0xff] %vm330, %v328
        %332 = vrot.lane.b32.xlu0 %v283, 123
        %v333 = vpop.permute.xlu0 %332
        %vm335 = vcmask 1048536
        %336 = vst.msk [vmem:[#allocation2 + $0x28] sm:$0xff] %vm335, %v333
        %337 = vrot.lane.b32.xlu0 %v282, 122
        %v338 = vpop.permute.xlu0 %337
        %vm340 = vcmask 998400
        %341 = vst.msk [vmem:[#allocation2 + $0x30] sm:$0xff] %vm340, %v338
        %342 = vrot.lane.b32.xlu0 %v283, 122
        %v343 = vpop.permute.xlu0 %342
        %vm345 = vcmask 1048528
        %346 = vst.msk [vmem:[#allocation2 + $0x30] sm:$0xff] %vm345, %v343
        %v347 = vld [vmem:[#allocation2] sm:$0xff]
        %v348 = vld [vmem:[#allocation2 + $0x8] sm:$0xff]
        %v349 = vld [vmem:[#allocation2 + $0x10] sm:$0xff]
        %v350 = vld [vmem:[#allocation2 + $0x18] sm:$0xff]
        %v351 = vld [vmem:[#allocation2 + $0x20] sm:$0xff]
        %v352 = vld [vmem:[#allocation2 + $0x28] sm:$0xff]
        %v353 = vld [vmem:[#allocation2 + $0x30] sm:$0xff]
        %v354 = vpack.c.bf16 %v348, %v347
        %v355 = vpack.c.bf16 %v350, %v349
        %v356 = vpack.c.bf16 %v352, %v351
        %v357 = vpack.c.bf16 %v353, %v353
        %v358 = vld [vmem:[#allocation6] sm:$0xf]
        %v359 = vld [vmem:[#allocation6 + $0x4] sm:$0xf]
        %v360 = vld [vmem:[#allocation6 + $0x8] sm:$0xf]
        %v361 = vld [vmem:[#allocation6 + $0xc] sm:$0xf]
        %v362 = vld [vmem:[%s3] sm:$0xff]
        %v363 = vld [vmem:[%s3 + $0x8] sm:$0xff]
        %v364 = vld [vmem:[%s3 + $0x10] sm:$0xff]
        %v365 = vld [vmem:[%s3 + $0x18] sm:$0xff]
        %367 = vset.pattern.permute.xlu0 0
        %368 = vperm.xlu0 %367, %v362
        %v369 = vpop.permute.xlu0 %368
        %372 = vset.pattern.permute.xlu0 0
        %373 = vperm.xlu0 %372, %v363
        %v374 = vpop.permute.xlu0 %373
        %377 = vset.pattern.permute.xlu0 0
        %378 = vperm.xlu0 %377, %v364
        %v379 = vpop.permute.xlu0 %378
        %382 = vset.pattern.permute.xlu0 0
        %383 = vperm.xlu0 %382, %v365
        %v384 = vpop.permute.xlu0 %383
        %v390 = vunpack.c.l.b16 %v358
        %v391 = vunpack.c.l.b16 %v359
        %v392 = vunpack.c.l.b16 %v360
        %v393 = vunpack.c.l.b16 %v361
        %v394 = vpack.c.b16 %v391, %v390
        %v395 = vpack.c.b16 %v393, %v392
        %vm396 = vcmask 457728
        %v398 = vsel %vm396, %v394, 0
        %v401 = vsel %vm396, %v395, 0
        %vm403 = vcmask 1043456
        %v405 = vsel %vm403, %v357, 0
        %407 = vmatprep.subr.bf16.mxu0 0
        %408 = vmatpush1.bf16.msra.mxu0 %v354
        %409 = vmatprep.subr.bf16.mxu0 0
        %410 = vmatpush1.bf16.msra.mxu0 %v355
        %411 = vmatprep.subr.bf16.mxu0 0
        %412 = vmatpush1.bf16.msra.mxu0 %v356
        %413 = vmatprep.subr.bf16.mxu0 0
        %414 = vmatpush1.bf16.msra.mxu0 %v405
        %415 = vmatprep.subr.bf16.mxu0 0
        %416 = vmatpush1.bf16.msra.mxu0 0
        %417 = vmatprep.subr.bf16.mxu0 0
        %418 = vmatpush1.bf16.msra.mxu0 0
        %419 = vmatprep.subr.bf16.mxu0 0
        %420 = vmatpush1.bf16.msra.mxu0 0
        %421 = vmatprep.subr.bf16.mxu0 0
        %422 = vmatpush1.bf16.msra.mxu0 0
        %423 = vmatprep.subr.bf16.mxu0 0
        %424 = vmatpush1.bf16.msra.mxu0 0
        %425 = vmatprep.subr.bf16.mxu0 0
        %426 = vmatpush1.bf16.msra.mxu0 0
        %427 = vmatprep.subr.bf16.mxu0 0
        %428 = vmatpush1.bf16.msra.mxu0 0
        %429 = vmatprep.subr.bf16.mxu0 0
        %430 = vmatpush1.bf16.msra.mxu0 0
        %431 = vmatprep.subr.bf16.mxu0 0
        %432 = vmatpush1.bf16.msra.mxu0 0
        %433 = vmatprep.subr.bf16.mxu0 0
        %434 = vmatpush1.bf16.msra.mxu0 0
        %435 = vmatprep.subr.bf16.mxu0 0
        %436 = vmatpush1.bf16.msra.mxu0 0
        %437 = vmatprep.subr.bf16.mxu0 0
        %438 = vmatpush1.bf16.msra.mxu0 0
        %439 = vmatprep.mubr.bf16.mxu0 0
        %440 = vmatmul.mubr.bf16.gmra.mrb[0].mxu0 %v398
        %v441 = vpop.f32.mrb[0].mxu0
        %v442 = vadd.f32 %v369, %v441
        %v443 = vpop.f32.mrb[0].mxu0
        %v444 = vpop.f32.mrb[0].mxu0
        %v445 = vadd.f32 %v374, %v444
        %v446 = vpop.f32.mrb[0].mxu0
        %447 = vmatprep.mubr.bf16.mxu0 0
        %448 = vmatmul.mubr.bf16.gmra.mrb[0].mxu0 %v401
        %v449 = vpop.f32.mrb[0].mxu0
        %v450 = vadd.f32 %v379, %v449
        %v451 = vpop.f32.mrb[0].mxu0
        %v452 = vpop.f32.mrb[0].mxu0
        %v453 = vadd.f32 %v384, %v452
        %v454 = vpop.f32.mrb[0].mxu0
        %455 = vdwg.mxu0
        %v456 = vpack.c.bf16 %v445, %v442
        %v457 = vpack.c.bf16 %v453, %v450
        %v460 = vunpack.c.l.b16 %v456
        %v461 = vunpack.c.h.b16 %v456
        %v462 = vunpack.c.l.b16 %v457
        %v463 = vunpack.c.h.b16 %v457
        %v464 = vpack.c.b16 %v460, %v460
        %v465 = vpack.c.b16 %v461, %v461
        %v466 = vpack.c.b16 %v462, %v462
        %v467 = vpack.c.b16 %v463, %v463
        %472 = vst [vmem:[%s271] sm:$0xf] %v464
        %473 = vst [vmem:[%s271 + $0x4] sm:$0xf] %v465
        %474 = vst [vmem:[%s271 + $0x8] sm:$0xf] %v466
        %475 = vst [vmem:[%s271 + $0xc] sm:$0xf] %v467
        %s476 = sand.u32 %s144, 1
        %s477 = scalar_lea.sflag [#allocation5], %s476
        %s478 = sand.u32 %s144, 1
        %s479 = smul.addr %s478, 16
        %s480 = scalar_lea.vmem [#allocation8], %s479
        // Predicated region
        $region45: #{tpu_custom_call.1} parent=35 // pred_check
          %p481 = pneg %p154
        $region46: #{tpu_custom_call.1} parent=35 // pred_check_branch
          %483 = sbr.rel (%p481) target = $region48
        $region47: #{tpu_custom_call.1} parent=35 // pred_region
          %s485 = ssub.s32 256, 256
          %486 = vsyncadd %s477, %s485
          %s487 = smul.addr %s26, 4
          %s488 = sadd.s32 %s27, %s487
          %s489 = smul.addr %s488, 64
          %s490 = scalar_lea.hbm %s4, %s489
          %s491 = sshll.u32 %s480, 4
          %s492 = int_to_ptr.vmem [resolvable:$true] %s491
          %497 = dma.vmem_to_hbm [thread:$0]  %s492, 256, %s490, %s477, 64, 64, 4
        $region48: #{tpu_custom_call.1} parent=35 // pred_fallthru
          _
      $region36: #{tpu_custom_call.1} parent=5 // pred_fallthru
        _
      %p498 = scmp.le.s32.totalorder 2, %s17
      // Predicated region
      $region49: #{tpu_custom_call.1} parent=5 // pred_check
        %p499 = pneg %p498
      $region50: #{tpu_custom_call.1} parent=5 // pred_check_branch
        %501 = sbr.rel (%p499) target = $region52
      $region51: #{tpu_custom_call.1} parent=5 // pred_region
        %s502 = ssub.s32 %s17, 2
        // Predicated region
        $region53: #{tpu_custom_call.1} parent=51 // pred_check
          %p503 = pneg %p160
        $region54: #{tpu_custom_call.1} parent=51 // pred_check_branch
          %505 = sbr.rel (%p503) target = $region56
        $region55: #{tpu_custom_call.1} parent=51 // pred_region
          %s506 = sand.u32 %s145, 1
          %s507 = scalar_lea.sflag [#allocation5], %s506
          %s508 = sand.u32 %s145, 1
          %s509 = smul.addr %s508, 16
          %s510 = scalar_lea.vmem [#allocation8], %s509
          %511 = dma.done %s507, 256
        $region56: #{tpu_custom_call.1} parent=51 // pred_fallthru
          _
      $region52: #{tpu_custom_call.1} parent=5 // pred_fallthru
        _
    $region6: #{tpu_custom_call.1} parent=1 // loop_footer
      %s21 = sadd.s32 1, %s17
    $region7: #{tpu_custom_call.1} parent=1 // loop_footer_branch
      %16 = sbr.rel target = $region3
    $region8: #{tpu_custom_call.1} parent=1 // loop_exit
      _
    %512 = vsyncpa [#allocation4], 1
    %s513 = scalar_lea.sflag [#allocation4], 1
    %514 = vsyncpa %s513, 1
    %515 = vsyncpa [#allocation7], 1
    %516 = vsyncpa [#allocation5], 1
    %s517 = scalar_lea.sflag [#allocation5], 1
    %518 = vsyncpa %s517, 1

</llo_original>
